<compile_context>
chip_gen: v7x
topology: tpu7x:2x2x1
jax: 0.10.0
libtpu: 0.0.40
codegen_flags: <defaults>
</compile_context>

<pallas_src>
import functools

import jax
import jax.numpy as jnp
from jax.experimental import pallas as pl
from jax.experimental.pallas import tpu as pltpu


def _option_critic_kernel(
    x_ref,            # (Bt, S)   compute dtype (bf16)
    wb_ref, bb_ref,   # (S, L) compute dtype, (1, L) f32        -- body linear
    wh_ref, bh_ref,   # (L, 2*O + O*A) compute dtype, (1, ...) f32  -- fused heads
    out_ref,          # (Bt, 2*O + 2*O*A) f32  packed [q | beta | log_pi | pi]
    *, num_options, action_dim,
):
    O, A = num_options, action_dim

    # Body: phi = relu(x @ W_body + b_body); MXU dot with f32 accumulation.
    phi = jnp.dot(x_ref[...], wb_ref[...], preferred_element_type=jnp.float32)
    phi = jnp.maximum(phi + bb_ref[...], 0.0)                       # (Bt, L) f32

    # Single fused head matmul; columns = [q | beta_logits | pi_logits].
    heads = jnp.dot(phi.astype(wh_ref.dtype), wh_ref[...],
                    preferred_element_type=jnp.float32) + bh_ref[...]

    q = heads[:, :O]                                                # (Bt, O)
    zb = heads[:, O:2 * O]                                          # (Bt, O)
    zpi = heads[:, 2 * O:]                                          # (Bt, O*A) 2-D

    # beta = sigmoid(zb): exp on the EUP + approximate reciprocal (EUP slot).
    beta = pl.reciprocal(1.0 + jnp.exp(-zb), approx=True)

    # Per-option softmax / log-softmax over the action dimension (f32 math).
    bt = zpi.shape[0]
    zpi3 = zpi.reshape(bt, O, A)
    m = jnp.max(zpi3, axis=-1, keepdims=True)
    shifted = zpi3 - m
    e = jnp.exp(shifted)
    s = jnp.sum(e, axis=-1, keepdims=True)
    log_pi = (shifted - jnp.log(s)).reshape(bt, O * A)
    pi = (e * pl.reciprocal(s, approx=True)).reshape(bt, O * A)

    # Single packed, lane-dense store per grid step (one writeback DMA).
    out_ref[...] = jnp.concatenate([q, beta, log_pi, pi], axis=-1)


def option_critic_forward(x, params, *, num_options, action_dim,
                          batch_tile=256, compute_dtype=jnp.bfloat16):
    O, A = num_options, action_dim
    B, S = x.shape
    L = params["w_body"].shape[1]
    H_in = 2 * O + O * A          # fused-head matmul output width
    H_out = 2 * O + 2 * O * A     # packed output slab width

    # Batch tile: multiple of 16 (bf16 sublane packing); pad batch to a multiple.
    bt = max(16, min(int(batch_tile), ((B + 15) // 16) * 16))
    bt = ((bt + 15) // 16) * 16
    B_pad = ((B + bt - 1) // bt) * bt
    x_pad = x if B_pad == B else jnp.pad(x, ((0, B_pad - B), (0, 0)))

    # bf16 inputs for the MXU (f32 accumulation inside the kernel); biases f32.
    x_c = x_pad.astype(compute_dtype)
    wb = params["w_body"].astype(compute_dtype)
    bb = params["b_body"].astype(jnp.float32)
    # Fuse the three head weights/biases into one matmul: [q | beta | pi].
    wh = jnp.concatenate(
        [params["w_q"], params["w_beta"], params["w_pi"]], axis=1
    ).astype(compute_dtype)
    bh = jnp.concatenate(
        [params["b_q"], params["b_beta"], params["b_pi"]], axis=1
    ).astype(jnp.float32)

    kernel = functools.partial(
        _option_critic_kernel, num_options=O, action_dim=A
    )

    out = pl.pallas_call(
        kernel,
        out_shape=jax.ShapeDtypeStruct((B_pad, H_out), jnp.float32),
        grid=(B_pad // bt,),
        in_specs=[
            pl.BlockSpec((bt, S), lambda i: (i, 0)),    # x: tiled over batch
            pl.BlockSpec((S, L), lambda i: (0, 0)),     # weights/biases stay
            pl.BlockSpec((1, L), lambda i: (0, 0)),     #   VMEM-resident across
            pl.BlockSpec((L, H_in), lambda i: (0, 0)),  #   grid steps
            pl.BlockSpec((1, H_in), lambda i: (0, 0)),
        ],
        out_specs=pl.BlockSpec((bt, H_out), lambda i: (i, 0)),
        compiler_params=pltpu.CompilerParams(
            dimension_semantics=("parallel",),          # megacore split on v7x
        ),
    )(x_c, wb, bb, wh, bh)

    out = out[:B]
    q = out[:, :O]
    beta = out[:, O:2 * O]
    log_pi = out[:, 2 * O:2 * O + O * A].reshape(B, O, A)
    pi = out[:, 2 * O + O * A:].reshape(B, O, A)
    return {"q": q, "beta": beta, "log_pi": log_pi, "pi": pi}


def init_params(key, state_dim, latent_dim, num_options, action_dim):
    """Deterministic synthetic init (stand-in for layer_init's orthogonal init)."""
    # TODO(synk): true orthogonal layer_init not reproduced; forward math unchanged.
    ks = jax.random.split(key, 8)

    def lin(kw, kb, fan_in, fan_out, scale=1.0):
        w = jax.random.normal(kw, (fan_in, fan_out), jnp.float32) * (scale / jnp.sqrt(fan_in))
        b = jax.random.normal(kb, (1, fan_out), jnp.float32) * 0.01
        return w, b

    w_body, b_body = lin(ks[0], ks[1], state_dim, latent_dim)
    w_q, b_q = lin(ks[2], ks[3], latent_dim, num_options, scale=1e-2)
    w_pi, b_pi = lin(ks[4], ks[5], latent_dim, num_options * action_dim, scale=1e-2)
    w_beta, b_beta = lin(ks[6], ks[7], latent_dim, num_options, scale=1e-2)
    return {
        "w_body": w_body, "b_body": b_body,
        "w_q": w_q, "b_q": b_q,
        "w_pi": w_pi, "b_pi": b_pi,
        "w_beta": w_beta, "b_beta": b_beta,
    }


def _reference(x, params, num_options, action_dim, compute_dtype=jnp.bfloat16):
    """Pure-JAX reference mirroring the kernel's bf16-in / f32-accumulate casts."""
    O, A = num_options, action_dim
    xc = x.astype(compute_dtype)
    wb = params["w_body"].astype(compute_dtype)
    phi = jnp.maximum(
        jnp.dot(xc, wb, preferred_element_type=jnp.float32) + params["b_body"], 0.0)
    phic = phi.astype(compute_dtype)

    def head(w, b):
        return jnp.dot(phic, w.astype(compute_dtype),
                       preferred_element_type=jnp.float32) + b

    q = head(params["w_q"], params["b_q"])
    beta = jax.nn.sigmoid(head(params["w_beta"], params["b_beta"]))
    logits = head(params["w_pi"], params["b_pi"]).reshape(-1, O, A)
    return {
        "q": q,
        "beta": beta,
        "log_pi": jax.nn.log_softmax(logits, axis=-1),
        "pi": jax.nn.softmax(logits, axis=-1),
    }


if __name__ == "__main__":
    # Small, forward-consistent shapes.
    batch = 2
    state_dim = 16
    latent_dim = 32
    num_options = 4
    action_dim = 6

    key = jax.random.PRNGKey(0)
    k_x, k_p = jax.random.split(key)
    x = jax.random.normal(k_x, (batch, state_dim), jnp.float32)
    params = init_params(k_p, state_dim, latent_dim, num_options, action_dim)

    out = option_critic_forward(x, params, num_options=num_options, action_dim=action_dim)
    jax.block_until_ready(out)

    ref = _reference(x, params, num_options, action_dim)
    # q / log_pi follow the exact f32-accumulate path; beta / pi use the
    # EUP approximate reciprocal, so they get a slightly looser tolerance.
    tol = {"q": 2e-5, "log_pi": 2e-5, "beta": 2e-3, "pi": 2e-3}
    for name in ("q", "beta", "log_pi", "pi"):
        assert out[name].shape == ref[name].shape, name
        assert jnp.allclose(out[name], ref[name], atol=tol[name], rtol=tol[name]), name

    print("KERNEL_OK")
</pallas_src>

<mosaic_0001>
module attributes {stable_mosaic.version = 11 : i64} {
  func.func @_option_critic_kernel(%arg0: i32, %arg1: memref<16x16xbf16, #tpu.memory_space<vmem>>, %arg2: memref<16x32xbf16, #tpu.memory_space<vmem>>, %arg3: memref<1x32xf32, #tpu.memory_space<vmem>>, %arg4: memref<32x32xbf16, #tpu.memory_space<vmem>>, %arg5: memref<1x32xf32, #tpu.memory_space<vmem>>, %arg6: memref<16x56xf32, #tpu.memory_space<vmem>>) attributes {dimension_semantics = [#tpu.dimension_semantics<parallel>], iteration_bounds = array<i64: 1>, scalar_prefetch = 0 : i64, scratch_operands = 0 : i64, tpu.core_type = #tpu.core_type<tc>, window_params = [{transform_indices = @transform_0, window_bounds = array<i64: 16, 16>}, {pipeline_mode = #tpu.pipeline_mode<synchronous>, transform_indices = @transform_1, window_bounds = array<i64: 16, 32>}, {pipeline_mode = #tpu.pipeline_mode<synchronous>, transform_indices = @transform_2, window_bounds = array<i64: 1, 32>}, {pipeline_mode = #tpu.pipeline_mode<synchronous>, transform_indices = @transform_3, window_bounds = array<i64: 32, 32>}, {pipeline_mode = #tpu.pipeline_mode<synchronous>, transform_indices = @transform_4, window_bounds = array<i64: 1, 32>}, {transform_indices = @transform_5, window_bounds = array<i64: 16, 56>}]} {
    %c0 = arith.constant 0 : index
    %c0_0 = arith.constant 0 : index
    %0 = vector.load %arg1[%c0, %c0_0] : memref<16x16xbf16, #tpu.memory_space<vmem>>, vector<16x16xbf16>
    %c0_1 = arith.constant 0 : index
    %c0_2 = arith.constant 0 : index
    %1 = vector.load %arg2[%c0_1, %c0_2] : memref<16x32xbf16, #tpu.memory_space<vmem>>, vector<16x32xbf16>
    %cst = arith.constant dense<0.000000e+00> : vector<16x32xf32>
    %2 = tpu.matmul %0, %1, %cst {dimension_numbers = #tpu.dot_dimension_numbers<[1], [0], [0], [1], [0, 0, 1, 1], [], []>} : vector<16x16xbf16>, vector<16x32xbf16>, vector<16x32xf32> -> vector<16x32xf32>
    %c0_3 = arith.constant 0 : index
    %c0_4 = arith.constant 0 : index
    %3 = vector.load %arg3[%c0_3, %c0_4] : memref<1x32xf32, #tpu.memory_space<vmem>>, vector<1x32xf32>
    %4 = vector.broadcast %3 : vector<1x32xf32> to vector<16x32xf32>
    %5 = arith.addf %2, %4 : vector<16x32xf32>
    %cst_5 = arith.constant 0.000000e+00 : f32
    %6 = vector.broadcast %cst_5 : f32 to vector<16x32xf32>
    %7 = arith.maximumf %5, %6 : vector<16x32xf32>
    %8 = arith.truncf %7 : vector<16x32xf32> to vector<16x32xbf16>
    %c0_6 = arith.constant 0 : index
    %c0_7 = arith.constant 0 : index
    %9 = vector.load %arg4[%c0_6, %c0_7] : memref<32x32xbf16, #tpu.memory_space<vmem>>, vector<32x32xbf16>
    %cst_8 = arith.constant dense<0.000000e+00> : vector<16x32xf32>
    %10 = tpu.matmul %8, %9, %cst_8 {dimension_numbers = #tpu.dot_dimension_numbers<[1], [0], [0], [1], [0, 0, 1, 1], [], []>} : vector<16x32xbf16>, vector<32x32xbf16>, vector<16x32xf32> -> vector<16x32xf32>
    %c0_9 = arith.constant 0 : index
    %c0_10 = arith.constant 0 : index
    %11 = vector.load %arg5[%c0_9, %c0_10] : memref<1x32xf32, #tpu.memory_space<vmem>>, vector<1x32xf32>
    %12 = vector.broadcast %11 : vector<1x32xf32> to vector<16x32xf32>
    %13 = arith.addf %10, %12 : vector<16x32xf32>
    %14 = vector.extract_strided_slice %13 {offsets = [0, 0], sizes = [16, 4], strides = [1, 1]} : vector<16x32xf32> to vector<16x4xf32>
    %15 = vector.extract_strided_slice %13 {offsets = [0, 4], sizes = [16, 4], strides = [1, 1]} : vector<16x32xf32> to vector<16x4xf32>
    %16 = vector.extract_strided_slice %13 {offsets = [0, 8], sizes = [16, 24], strides = [1, 1]} : vector<16x32xf32> to vector<16x24xf32>
    %cst_11 = arith.constant 0.000000e+00 : f32
    %17 = vector.broadcast %cst_11 : f32 to vector<16x4xf32>
    %18 = arith.subf %17, %15 : vector<16x4xf32>
    %19 = math.exp %18 : vector<16x4xf32>
    %cst_12 = arith.constant 1.000000e+00 : f32
    %20 = vector.broadcast %cst_12 : f32 to vector<16x4xf32>
    %21 = arith.addf %20, %19 : vector<16x4xf32>
    %22 = tpu.reciprocal %21 {approx = true} : vector<16x4xf32> -> vector<16x4xf32>
    %23 = vector.shape_cast %16 : vector<16x24xf32> to vector<16x4x6xf32>
    %cst_13 = arith.constant dense<0xFF800000> : vector<16x4xf32>
    %24 = vector.multi_reduction <maximumf>, %23, %cst_13 [2] : vector<16x4x6xf32> to vector<16x4xf32>
    %25 = vector.shape_cast %24 : vector<16x4xf32> to vector<16x4x1xf32>
    %26 = vector.broadcast %25 : vector<16x4x1xf32> to vector<16x4x6xf32>
    %27 = arith.subf %23, %26 : vector<16x4x6xf32>
    %28 = math.exp %27 : vector<16x4x6xf32>
    %cst_14 = arith.constant dense<0.000000e+00> : vector<16x4xf32>
    %29 = vector.multi_reduction <add>, %28, %cst_14 [2] : vector<16x4x6xf32> to vector<16x4xf32>
    %30 = vector.shape_cast %29 : vector<16x4xf32> to vector<16x4x1xf32>
    %31 = math.log %30 : vector<16x4x1xf32>
    %32 = vector.broadcast %31 : vector<16x4x1xf32> to vector<16x4x6xf32>
    %33 = arith.subf %27, %32 : vector<16x4x6xf32>
    %34 = vector.shape_cast %33 : vector<16x4x6xf32> to vector<16x24xf32>
    %35 = tpu.reciprocal %30 {approx = true} : vector<16x4x1xf32> -> vector<16x4x1xf32>
    %36 = vector.broadcast %35 : vector<16x4x1xf32> to vector<16x4x6xf32>
    %37 = arith.mulf %28, %36 : vector<16x4x6xf32>
    %38 = vector.shape_cast %37 : vector<16x4x6xf32> to vector<16x24xf32>
    %39 = tpu.concatenate %14, %22, %34, %38 in 1 : vector<16x4xf32>, vector<16x4xf32>, vector<16x24xf32>, vector<16x24xf32> -> vector<16x56xf32>
    %c0_15 = arith.constant 0 : index
    %c0_16 = arith.constant 0 : index
    %40 = vector.load %arg6[%c0_15, %c0_16] : memref<16x56xf32, #tpu.memory_space<vmem>>, vector<16x56xf32>
    tpu.vector_store %arg6[%c0_15, %c0_16], %39 {strides = array<i32>} : memref<16x56xf32, #tpu.memory_space<vmem>>, vector<16x56xf32>,
    return
  }
  func.func @transform_0(%arg0: i32) -> (i32, i32) {
    %c0_i32 = arith.constant 0 : i32
    %c0_i32_0 = arith.constant 0 : i32
    return %arg0, %c0_i32 : i32, i32
  }
  func.func @transform_1(%arg0: i32) -> (i32, i32) {
    %c0_i32 = arith.constant 0 : i32
    %c0_i32_0 = arith.constant 0 : i32
    %c0_i32_1 = arith.constant 0 : i32
    return %c0_i32, %c0_i32_0 : i32, i32
  }
  func.func @transform_2(%arg0: i32) -> (i32, i32) {
    %c0_i32 = arith.constant 0 : i32
    %c0_i32_0 = arith.constant 0 : i32
    %c0_i32_1 = arith.constant 0 : i32
    return %c0_i32, %c0_i32_0 : i32, i32
  }
  func.func @transform_3(%arg0: i32) -> (i32, i32) {
    %c0_i32 = arith.constant 0 : i32
    %c0_i32_0 = arith.constant 0 : i32
    %c0_i32_1 = arith.constant 0 : i32
    return %c0_i32, %c0_i32_0 : i32, i32
  }
  func.func @transform_4(%arg0: i32) -> (i32, i32) {
    %c0_i32 = arith.constant 0 : i32
    %c0_i32_0 = arith.constant 0 : i32
    %c0_i32_1 = arith.constant 0 : i32
    return %c0_i32, %c0_i32_0 : i32, i32
  }
  func.func @transform_5(%arg0: i32) -> (i32, i32) {
    %c0_i32 = arith.constant 0 : i32
    %c0_i32_0 = arith.constant 0 : i32
    return %arg0, %c0_i32 : i32, i32
  }
}

</mosaic_0001>

<llo_original>
// kernel: tpu_custom_call.1
$region0: #{tpu_custom_call.1}
  #allocation0 [shape = 'u32[]', space=smem, size = 0x4, offset = 0x4, fixed_abs, tag = 'smem constant byte address 0x4 - core index']
  #allocation1 [shape = 'u32[144,128]{1,0:T(1,128)}', space=vmem, size = 0x12000, scoped, tag = 'internal scratch']
  %s0 = inlined_call_operand.hbm [shape: bf16[16,16], index: 0, kind: input, shape index: {}]
  %s1 = inlined_call_operand.hbm [shape: bf16[16,32], index: 1, kind: input, shape index: {}]
  %s2 = inlined_call_operand.vmem [shape: f32[1,32], index: 2, kind: input, shape index: {}]
  %s3 = inlined_call_operand.hbm [shape: bf16[32,32], index: 3, kind: input, shape index: {}]
  %s4 = inlined_call_operand.vmem [shape: f32[1,32], index: 4, kind: input, shape index: {}]
  %s5 = inlined_call_operand.hbm [shape: f32[16,56], index: 5, kind: output, shape index: {}]
  %s6 = sld [smem:[#allocation0]]
  $region42: #{tpu_custom_call.1} parent=0
    _
  %s8 = ssub.s32 1, %s6
  %s9 = scalar_select 0, %s8, %s6
  $region1: #{tpu_custom_call.1} parent=0
    #allocation2 [shape = 'u8[4096]{0}', space=vmem, size = 0x1000, scoped, tag = 'input window, operand 0, single buffered']
    #allocation3 [shape = 's32[1]{0}', space=sflag, size = 0x4, scoped, tag = 'scoped memory for tpu_custom_call.1']
    #allocation4 [shape = 's32[1]{0}', space=sflag, size = 0x4, scoped, tag = 'scoped memory for tpu_custom_call.1']
    #allocation5 [shape = 'u8[4096]{0}', space=vmem, size = 0x1000, scoped, tag = 'input window, operand 1, single buffered']
    #allocation6 [shape = 's32[1]{0}', space=sflag, size = 0x4, scoped, tag = 'scoped memory for tpu_custom_call.1']
    #allocation7 [shape = 'u8[8192]{0}', space=vmem, size = 0x2000, scoped, tag = 'input window, operand 3, single buffered']
    #allocation8 [shape = 'u8[8192]{0}', space=vmem, size = 0x2000, scoped, tag = 'output window, operand 0, single buffered']
    %10 = vsyncpa [#allocation3], 0
    %11 = vsyncpa [#allocation6], 0
    %12 = vsyncpa [#allocation4], 0
    // Predicated region
    $region2: #{tpu_custom_call.1} parent=1 // pred_check
      _
    $region3: #{tpu_custom_call.1} parent=1 // pred_check_branch
      %14 = sbr.rel (0) target = $region5
    $region4: #{tpu_custom_call.1} parent=1 // pred_region
      %s16 = ssub.s32 128, 128
      %17 = vsyncadd [#allocation3], %s16
      %s18 = sshll.u32 [#allocation2], 4
      %s19 = int_to_ptr.vmem [resolvable:$true] %s18
      %24 = dma.hbm_to_vmem [thread:$0]  %s0, 128, %s19, [#allocation3], 64, 64, 4
    $region5: #{tpu_custom_call.1} parent=1 // pred_fallthru
      _
    // Predicated region
    $region6: #{tpu_custom_call.1} parent=1 // pred_check
      _
    $region7: #{tpu_custom_call.1} parent=1 // pred_check_branch
      %26 = sbr.rel (0) target = $region9
    $region8: #{tpu_custom_call.1} parent=1 // pred_region
      %s28 = ssub.s32 128, 128
      %29 = vsyncadd [#allocation6], %s28
      %s30 = sshll.u32 [#allocation5], 4
      %s31 = int_to_ptr.vmem [resolvable:$true] %s30
      %36 = dma.hbm_to_vmem [thread:$0]  %s1, 128, %s31, [#allocation6], 64, 64, 4
    $region9: #{tpu_custom_call.1} parent=1 // pred_fallthru
      _
    // Predicated region
    $region10: #{tpu_custom_call.1} parent=1 // pred_check
      _
    $region11: #{tpu_custom_call.1} parent=1 // pred_check_branch
      %38 = sbr.rel (0) target = $region13
    $region12: #{tpu_custom_call.1} parent=1 // pred_region
      _
    $region13: #{tpu_custom_call.1} parent=1 // pred_fallthru
      _
    // Predicated region
    $region14: #{tpu_custom_call.1} parent=1 // pred_check
      _
    $region15: #{tpu_custom_call.1} parent=1 // pred_check_branch
      %40 = sbr.rel (0) target = $region17
    $region16: #{tpu_custom_call.1} parent=1 // pred_region
      %s42 = ssub.s32 256, 256
      %43 = vsyncadd [#allocation6], %s42
      %s44 = sshll.u32 [#allocation7], 4
      %s45 = int_to_ptr.vmem [resolvable:$true] %s44
      %50 = dma.hbm_to_vmem [thread:$0]  %s3, 256, %s45, [#allocation6], 64, 64, 4
    $region17: #{tpu_custom_call.1} parent=1 // pred_fallthru
      _
    // Predicated region
    $region18: #{tpu_custom_call.1} parent=1 // pred_check
      _
    $region19: #{tpu_custom_call.1} parent=1 // pred_check_branch
      %52 = sbr.rel (0) target = $region21
    $region20: #{tpu_custom_call.1} parent=1 // pred_region
      _
    $region21: #{tpu_custom_call.1} parent=1 // pred_fallthru
      _
    // Predicated region
    $region22: #{tpu_custom_call.1} parent=1 // pred_check
      _
    $region23: #{tpu_custom_call.1} parent=1 // pred_check_branch
      %54 = sbr.rel (0) target = $region25
    $region24: #{tpu_custom_call.1} parent=1 // pred_region
      %55 = dma.done [#allocation3], 128
    $region25: #{tpu_custom_call.1} parent=1 // pred_fallthru
      _
    // Predicated region
    $region26: #{tpu_custom_call.1} parent=1 // pred_check
      _
    $region27: #{tpu_custom_call.1} parent=1 // pred_check_branch
      %57 = sbr.rel (0) target = $region29
    $region28: #{tpu_custom_call.1} parent=1 // pred_region
      %58 = dma.done [#allocation6], 128
    $region29: #{tpu_custom_call.1} parent=1 // pred_fallthru
      _
    // Predicated region
    $region30: #{tpu_custom_call.1} parent=1 // pred_check
      _
    $region31: #{tpu_custom_call.1} parent=1 // pred_check_branch
      %60 = sbr.rel (0) target = $region33
    $region32: #{tpu_custom_call.1} parent=1 // pred_region
      %61 = dma.done [#allocation6], 256
    $region33: #{tpu_custom_call.1} parent=1 // pred_fallthru
      _
    %v63 = vld [vmem:[#allocation2] sm:$0xf]
    %v64 = vld [vmem:[#allocation2 + $0x4] sm:$0xf]
    %v65 = vld [vmem:[#allocation5] sm:$0xf]
    %v66 = vld [vmem:[#allocation5 + $0x4] sm:$0xf]
    %v67 = vld [vmem:[%s2] sm:$0x1]
    %v69 = vlaneseq
    %v70 = vshrl.u32 %v69, 7
    %v71 = vsub.s32 0, %v70
    %v72 = vrot.slane %v67, %v71
    %v76 = vunpack.c.l.b16 %v63
    %v77 = vunpack.c.l.b16 %v64
    %v78 = vpack.c.b16 %v77, %v76
    %v81 = vunpack.c.l.b16 %v65
    %v82 = vunpack.c.l.b16 %v66
    %v83 = vpack.c.b16 %v82, %v81
    %vm85 = vcmask 130048
    %v87 = vsel %vm85, %v78, 0
    %89 = vmatprep.subr.bf16.mxu0 0
    %90 = vmatpush1.bf16.msra.mxu0 %v83
    %91 = vmatprep.subr.bf16.mxu0 0
    %92 = vmatpush1.bf16.msra.mxu0 0
    %93 = vmatprep.subr.bf16.mxu0 0
    %94 = vmatpush1.bf16.msra.mxu0 0
    %95 = vmatprep.subr.bf16.mxu0 0
    %96 = vmatpush1.bf16.msra.mxu0 0
    %97 = vmatprep.subr.bf16.mxu0 0
    %98 = vmatpush1.bf16.msra.mxu0 0
    %99 = vmatprep.subr.bf16.mxu0 0
    %100 = vmatpush1.bf16.msra.mxu0 0
    %101 = vmatprep.subr.bf16.mxu0 0
    %102 = vmatpush1.bf16.msra.mxu0 0
    %103 = vmatprep.subr.bf16.mxu0 0
    %104 = vmatpush1.bf16.msra.mxu0 0
    %105 = vmatprep.subr.bf16.mxu0 0
    %106 = vmatpush1.bf16.msra.mxu0 0
    %107 = vmatprep.subr.bf16.mxu0 0
    %108 = vmatpush1.bf16.msra.mxu0 0
    %109 = vmatprep.subr.bf16.mxu0 0
    %110 = vmatpush1.bf16.msra.mxu0 0
    %111 = vmatprep.subr.bf16.mxu0 0
    %112 = vmatpush1.bf16.msra.mxu0 0
    %113 = vmatprep.subr.bf16.mxu0 0
    %114 = vmatpush1.bf16.msra.mxu0 0
    %115 = vmatprep.subr.bf16.mxu0 0
    %116 = vmatpush1.bf16.msra.mxu0 0
    %117 = vmatprep.subr.bf16.mxu0 0
    %118 = vmatpush1.bf16.msra.mxu0 0
    %119 = vmatprep.subr.bf16.mxu0 0
    %120 = vmatpush1.bf16.msra.mxu0 0
    %121 = vmatprep.mubr.bf16.mxu0 0
    %122 = vmatmul.mubr.bf16.gmra.mrb[0].mxu0 %v87
    %v123 = vpop.f32.mrb[0].mxu0
    %v124 = vadd.f32 %v72, %v123
    %v125 = vpop.f32.mrb[0].mxu0
    %v126 = vpop.f32.mrb[0].mxu0
    %v127 = vadd.f32 %v72, %v126
    %v128 = vpop.f32.mrb[0].mxu0
    %129 = vdwg.mxu0
    %v130 = vmax.f32 %v124, 0.0
    %v131 = vmax.f32 %v127, 0.0
    %v132 = vpack.c.bf16 %v131, %v130
    %v133 = vld [vmem:[#allocation7] sm:$0xf]
    %v134 = vld [vmem:[#allocation7 + $0x4] sm:$0xf]
    %v135 = vld [vmem:[#allocation7 + $0x8] sm:$0xf]
    %v136 = vld [vmem:[#allocation7 + $0xc] sm:$0xf]
    %v137 = vld [vmem:[%s4] sm:$0x1]
    %v139 = vlaneseq
    %v140 = vshrl.u32 %v139, 7
    %v141 = vsub.s32 0, %v140
    %v142 = vrot.slane %v137, %v141
    %v148 = vunpack.c.l.b16 %v133
    %v149 = vunpack.c.l.b16 %v134
    %v150 = vunpack.c.l.b16 %v135
    %v151 = vunpack.c.l.b16 %v136
    %v152 = vpack.c.b16 %v149, %v148
    %v153 = vpack.c.b16 %v151, %v150
    %vm156 = vcmask 261120
    %v158 = vsel %vm156, %v132, 0
    %160 = vmatprep.subr.bf16.mxu0 0
    %161 = vmatpush1.bf16.msra.mxu0 %v152
    %162 = vmatprep.subr.bf16.mxu0 0
    %163 = vmatpush1.bf16.msra.mxu0 %v153
    %164 = vmatprep.subr.bf16.mxu0 0
    %165 = vmatpush1.bf16.msra.mxu0 0
    %166 = vmatprep.subr.bf16.mxu0 0
    %167 = vmatpush1.bf16.msra.mxu0 0
    %168 = vmatprep.subr.bf16.mxu0 0
    %169 = vmatpush1.bf16.msra.mxu0 0
    %170 = vmatprep.subr.bf16.mxu0 0
    %171 = vmatpush1.bf16.msra.mxu0 0
    %172 = vmatprep.subr.bf16.mxu0 0
    %173 = vmatpush1.bf16.msra.mxu0 0
    %174 = vmatprep.subr.bf16.mxu0 0
    %175 = vmatpush1.bf16.msra.mxu0 0
    %176 = vmatprep.subr.bf16.mxu0 0
    %177 = vmatpush1.bf16.msra.mxu0 0
    %178 = vmatprep.subr.bf16.mxu0 0
    %179 = vmatpush1.bf16.msra.mxu0 0
    %180 = vmatprep.subr.bf16.mxu0 0
    %181 = vmatpush1.bf16.msra.mxu0 0
    %182 = vmatprep.subr.bf16.mxu0 0
    %183 = vmatpush1.bf16.msra.mxu0 0
    %184 = vmatprep.subr.bf16.mxu0 0
    %185 = vmatpush1.bf16.msra.mxu0 0
    %186 = vmatprep.subr.bf16.mxu0 0
    %187 = vmatpush1.bf16.msra.mxu0 0
    %188 = vmatprep.subr.bf16.mxu0 0
    %189 = vmatpush1.bf16.msra.mxu0 0
    %190 = vmatprep.subr.bf16.mxu0 0
    %191 = vmatpush1.bf16.msra.mxu0 0
    %192 = vmatprep.mubr.bf16.mxu0 0
    %193 = vmatmul.mubr.bf16.gmra.mrb[0].mxu0 %v158
    %v194 = vpop.f32.mrb[0].mxu0
    %v195 = vadd.f32 %v142, %v194
    %v196 = vpop.f32.mrb[0].mxu0
    %v197 = vpop.f32.mrb[0].mxu0
    %v198 = vadd.f32 %v142, %v197
    %v199 = vpop.f32.mrb[0].mxu0
    %200 = vdwg.mxu0
    %v201 = vsub.f32 0.0, %v195
    %v202 = vsub.f32 0.0, %v198
    %v203 = vmul.f32 %v201, 1.442695
    %v204 = vpow.pop %v203
    %v205 = vmul.f32 %v202, 1.442695
    %v206 = vpow.pop %v205
    %v207 = vadd.f32 %v204, 1.0
    %v208 = vadd.f32 %v206, 1.0
    %v209 = vrcp.pop %v207
    %v210 = vrcp.pop %v208
    %213 = vrot.lane.b32.xlu0 %v195, 122
    %v214 = vpop.permute.xlu0 %213
    %215 = vrot.lane.b32.xlu0 %v198, 122
    %v216 = vpop.permute.xlu0 %215
    %217 = vrot.lane.b32.xlu0 %v195, 116
    %v218 = vpop.permute.xlu0 %217
    %219 = vrot.lane.b32.xlu0 %v198, 116
    %v220 = vpop.permute.xlu0 %219
    %221 = vrot.lane.b32.xlu0 %v195, 110
    %v222 = vpop.permute.xlu0 %221
    %223 = vrot.lane.b32.xlu0 %v198, 110
    %v224 = vpop.permute.xlu0 %223
    %225 = vrot.lane.b32.xlu0 %v195, 120
    %v226 = vpop.permute.xlu0 %225
    %227 = vrot.lane.b32.xlu0 %v198, 120
    %v228 = vpop.permute.xlu0 %227
    %229 = vrot.lane.b32.xlu0 %v214, 120
    %v230 = vpop.permute.xlu0 %229
    %231 = vrot.lane.b32.xlu0 %v216, 120
    %v232 = vpop.permute.xlu0 %231
    %233 = vrot.lane.b32.xlu0 %v218, 120
    %v234 = vpop.permute.xlu0 %233
    %235 = vrot.lane.b32.xlu0 %v220, 120
    %v236 = vpop.permute.xlu0 %235
    %237 = vrot.lane.b32.xlu0 %v222, 120
    %v238 = vpop.permute.xlu0 %237
    %239 = vrot.lane.b32.xlu0 %v224, 120
    %v240 = vpop.permute.xlu0 %239
    %v249 = vcombine.low %v226, %v234
    %v250 = vcombine.high %v226, %v234
    %v252 = vunpack.c.l.s4 1983009808
    %v253 = vunpack.c.0.s8 %v252
    %v254 = vlaneseq
    %v255 = vshrl.u32 %v254, 7
    %v256 = vsub.s32 %v253, %v255
    %v257 = vrot.slane %v249, %v256
    %v259 = vunpack.c.l.s4 1983009808
    %v260 = vunpack.c.0.s8 %v259
    %v261 = vlaneseq
    %v262 = vshrl.u32 %v261, 7
    %v263 = vsub.s32 %v260, %v262
    %v264 = vrot.slane %v250, %v263
    %v265 = vcombine.low %v230, %v238
    %v266 = vcombine.high %v230, %v238
    %v268 = vunpack.c.l.s4 1983009808
    %v269 = vunpack.c.0.s8 %v268
    %v270 = vlaneseq
    %v271 = vshrl.u32 %v270, 7
    %v272 = vsub.s32 %v269, %v271
    %v273 = vrot.slane %v265, %v272
    %v275 = vunpack.c.l.s4 1983009808
    %v276 = vunpack.c.0.s8 %v275
    %v277 = vlaneseq
    %v278 = vshrl.u32 %v277, 7
    %v279 = vsub.s32 %v276, %v278
    %v280 = vrot.slane %v266, %v279
    %v281 = vcombine.low %v257, %v273
    %v282 = vcombine.high %v257, %v273
    %v284 = vunpack.c.l.s4 1934713408
    %v285 = vunpack.c.0.s8 %v284
    %v286 = vlaneseq
    %v287 = vshrl.u32 %v286, 7
    %v288 = vsub.s32 %v285, %v287
    %v289 = vrot.slane %v281, %v288
    %v291 = vunpack.c.l.s4 1934713408
    %v292 = vunpack.c.0.s8 %v291
    %v293 = vlaneseq
    %v294 = vshrl.u32 %v293, 7
    %v295 = vsub.s32 %v292, %v294
    %v296 = vrot.slane %v282, %v295
    %v297 = vcombine.low %v264, %v280
    %v298 = vcombine.high %v264, %v280
    %v300 = vunpack.c.l.s4 1934713408
    %v301 = vunpack.c.0.s8 %v300
    %v302 = vlaneseq
    %v303 = vshrl.u32 %v302, 7
    %v304 = vsub.s32 %v301, %v303
    %v305 = vrot.slane %v297, %v304
    %v307 = vunpack.c.l.s4 1934713408
    %v308 = vunpack.c.0.s8 %v307
    %v309 = vlaneseq
    %v310 = vshrl.u32 %v309, 7
    %v311 = vsub.s32 %v308, %v310
    %v312 = vrot.slane %v298, %v311
    %v313 = vcombine.high %v289, 0.0
    %v314 = vcombine.high %v296, 0.0
    %v315 = vcombine.high %v305, 0.0
    %v316 = vcombine.high %v312, 0.0
    %v317 = vcombine.low %v228, %v236
    %v318 = vcombine.high %v228, %v236
    %v320 = vunpack.c.l.s4 1983009808
    %v321 = vunpack.c.0.s8 %v320
    %v322 = vlaneseq
    %v323 = vshrl.u32 %v322, 7
    %v324 = vsub.s32 %v321, %v323
    %v325 = vrot.slane %v317, %v324
    %v327 = vunpack.c.l.s4 1983009808
    %v328 = vunpack.c.0.s8 %v327
    %v329 = vlaneseq
    %v330 = vshrl.u32 %v329, 7
    %v331 = vsub.s32 %v328, %v330
    %v332 = vrot.slane %v318, %v331
    %v333 = vcombine.low %v232, %v240
    %v334 = vcombine.high %v232, %v240
    %v336 = vunpack.c.l.s4 1983009808
    %v337 = vunpack.c.0.s8 %v336
    %v338 = vlaneseq
    %v339 = vshrl.u32 %v338, 7
    %v340 = vsub.s32 %v337, %v339
    %v341 = vrot.slane %v333, %v340
    %v343 = vunpack.c.l.s4 1983009808
    %v344 = vunpack.c.0.s8 %v343
    %v345 = vlaneseq
    %v346 = vshrl.u32 %v345, 7
    %v347 = vsub.s32 %v344, %v346
    %v348 = vrot.slane %v334, %v347
    %v349 = vcombine.low %v325, %v341
    %v350 = vcombine.high %v325, %v341
    %v352 = vunpack.c.l.s4 1934713408
    %v353 = vunpack.c.0.s8 %v352
    %v354 = vlaneseq
    %v355 = vshrl.u32 %v354, 7
    %v356 = vsub.s32 %v353, %v355
    %v357 = vrot.slane %v349, %v356
    %v359 = vunpack.c.l.s4 1934713408
    %v360 = vunpack.c.0.s8 %v359
    %v361 = vlaneseq
    %v362 = vshrl.u32 %v361, 7
    %v363 = vsub.s32 %v360, %v362
    %v364 = vrot.slane %v350, %v363
    %v365 = vcombine.low %v332, %v348
    %v366 = vcombine.high %v332, %v348
    %v368 = vunpack.c.l.s4 1934713408
    %v369 = vunpack.c.0.s8 %v368
    %v370 = vlaneseq
    %v371 = vshrl.u32 %v370, 7
    %v372 = vsub.s32 %v369, %v371
    %v373 = vrot.slane %v365, %v372
    %v375 = vunpack.c.l.s4 1934713408
    %v376 = vunpack.c.0.s8 %v375
    %v377 = vlaneseq
    %v378 = vshrl.u32 %v377, 7
    %v379 = vsub.s32 %v376, %v378
    %v380 = vrot.slane %v366, %v379
    %v381 = vcombine.high %v357, 0.0
    %v382 = vcombine.high %v364, 0.0
    %v383 = vcombine.high %v373, 0.0
    %v384 = vcombine.high %v380, 0.0
    %vm385 = vcmask 44032
    %v386 = vsel %vm385, %v289, -inf
    %387 = vmax.xlane.f32.xlu0 %v386
    %v388 = vpop.xlane.xlu0 %387
    %v389 = vsel %vm385, %v313, -inf
    %390 = vmax.xlane.f32.xlu0 %v389
    %v391 = vpop.xlane.xlu0 %390
    %v392 = vsel %vm385, %v296, -inf
    %393 = vmax.xlane.f32.xlu0 %v392
    %v394 = vpop.xlane.xlu0 %393
    %v395 = vsel %vm385, %v314, -inf
    %396 = vmax.xlane.f32.xlu0 %v395
    %v397 = vpop.xlane.xlu0 %396
    %v398 = vsel %vm385, %v305, -inf
    %399 = vmax.xlane.f32.xlu0 %v398
    %v400 = vpop.xlane.xlu0 %399
    %v401 = vsel %vm385, %v315, -inf
    %402 = vmax.xlane.f32.xlu0 %v401
    %v403 = vpop.xlane.xlu0 %402
    %v404 = vsel %vm385, %v312, -inf
    %405 = vmax.xlane.f32.xlu0 %v404
    %v406 = vpop.xlane.xlu0 %405
    %v407 = vsel %vm385, %v316, -inf
    %408 = vmax.xlane.f32.xlu0 %v407
    %v409 = vpop.xlane.xlu0 %408
    %v410 = vsel %vm385, %v357, -inf
    %411 = vmax.xlane.f32.xlu0 %v410
    %v412 = vpop.xlane.xlu0 %411
    %v413 = vsel %vm385, %v381, -inf
    %414 = vmax.xlane.f32.xlu0 %v413
    %v415 = vpop.xlane.xlu0 %414
    %v416 = vsel %vm385, %v364, -inf
    %417 = vmax.xlane.f32.xlu0 %v416
    %v418 = vpop.xlane.xlu0 %417
    %v419 = vsel %vm385, %v382, -inf
    %420 = vmax.xlane.f32.xlu0 %v419
    %v421 = vpop.xlane.xlu0 %420
    %v422 = vsel %vm385, %v373, -inf
    %423 = vmax.xlane.f32.xlu0 %v422
    %v424 = vpop.xlane.xlu0 %423
    %v425 = vsel %vm385, %v383, -inf
    %426 = vmax.xlane.f32.xlu0 %v425
    %v427 = vpop.xlane.xlu0 %426
    %v428 = vsel %vm385, %v380, -inf
    %429 = vmax.xlane.f32.xlu0 %v428
    %v430 = vpop.xlane.xlu0 %429
    %v431 = vsel %vm385, %v384, -inf
    %432 = vmax.xlane.f32.xlu0 %v431
    %v433 = vpop.xlane.xlu0 %432
    %v434 = vsub.f32 %v289, %v388
    %v435 = vsub.f32 %v313, %v391
    %v436 = vsub.f32 %v296, %v394
    %v437 = vsub.f32 %v314, %v397
    %v438 = vsub.f32 %v305, %v400
    %v439 = vsub.f32 %v315, %v403
    %v440 = vsub.f32 %v312, %v406
    %v441 = vsub.f32 %v316, %v409
    %v442 = vsub.f32 %v357, %v412
    %v443 = vsub.f32 %v381, %v415
    %v444 = vsub.f32 %v364, %v418
    %v445 = vsub.f32 %v382, %v421
    %v446 = vsub.f32 %v373, %v424
    %v447 = vsub.f32 %v383, %v427
    %v448 = vsub.f32 %v380, %v430
    %v449 = vsub.f32 %v384, %v433
    %v450 = vmul.f32 %v434, 1.442695
    %v451 = vpow.pop %v450
    %v452 = vmul.f32 %v435, 1.442695
    %v453 = vpow.pop %v452
    %v454 = vmul.f32 %v436, 1.442695
    %v455 = vpow.pop %v454
    %v456 = vmul.f32 %v437, 1.442695
    %v457 = vpow.pop %v456
    %v458 = vmul.f32 %v438, 1.442695
    %v459 = vpow.pop %v458
    %v460 = vmul.f32 %v439, 1.442695
    %v461 = vpow.pop %v460
    %v462 = vmul.f32 %v440, 1.442695
    %v463 = vpow.pop %v462
    %v464 = vmul.f32 %v441, 1.442695
    %v465 = vpow.pop %v464
    %v466 = vmul.f32 %v442, 1.442695
    %v467 = vpow.pop %v466
    %v468 = vmul.f32 %v443, 1.442695
    %v469 = vpow.pop %v468
    %v470 = vmul.f32 %v444, 1.442695
    %v471 = vpow.pop %v470
    %v472 = vmul.f32 %v445, 1.442695
    %v473 = vpow.pop %v472
    %v474 = vmul.f32 %v446, 1.442695
    %v475 = vpow.pop %v474
    %v476 = vmul.f32 %v447, 1.442695
    %v477 = vpow.pop %v476
    %v478 = vmul.f32 %v448, 1.442695
    %v479 = vpow.pop %v478
    %v480 = vmul.f32 %v449, 1.442695
    %v481 = vpow.pop %v480
    %v482 = vsel %vm385, %v451, 0.0
    %483 = vadd.xlane.f32.xlu0 %v482
    %v484 = vpop.xlane.xlu0 %483
    %v485 = vsel %vm385, %v453, 0.0
    %486 = vadd.xlane.f32.xlu0 %v485
    %v487 = vpop.xlane.xlu0 %486
    %v488 = vsel %vm385, %v455, 0.0
    %489 = vadd.xlane.f32.xlu0 %v488
    %v490 = vpop.xlane.xlu0 %489
    %v491 = vsel %vm385, %v457, 0.0
    %492 = vadd.xlane.f32.xlu0 %v491
    %v493 = vpop.xlane.xlu0 %492
    %v494 = vsel %vm385, %v459, 0.0
    %495 = vadd.xlane.f32.xlu0 %v494
    %v496 = vpop.xlane.xlu0 %495
    %v497 = vsel %vm385, %v461, 0.0
    %498 = vadd.xlane.f32.xlu0 %v497
    %v499 = vpop.xlane.xlu0 %498
    %v500 = vsel %vm385, %v463, 0.0
    %501 = vadd.xlane.f32.xlu0 %v500
    %v502 = vpop.xlane.xlu0 %501
    %v503 = vsel %vm385, %v465, 0.0
    %504 = vadd.xlane.f32.xlu0 %v503
    %v505 = vpop.xlane.xlu0 %504
    %v506 = vsel %vm385, %v467, 0.0
    %507 = vadd.xlane.f32.xlu0 %v506
    %v508 = vpop.xlane.xlu0 %507
    %v509 = vsel %vm385, %v469, 0.0
    %510 = vadd.xlane.f32.xlu0 %v509
    %v511 = vpop.xlane.xlu0 %510
    %v512 = vsel %vm385, %v471, 0.0
    %513 = vadd.xlane.f32.xlu0 %v512
    %v514 = vpop.xlane.xlu0 %513
    %v515 = vsel %vm385, %v473, 0.0
    %516 = vadd.xlane.f32.xlu0 %v515
    %v517 = vpop.xlane.xlu0 %516
    %v518 = vsel %vm385, %v475, 0.0
    %519 = vadd.xlane.f32.xlu0 %v518
    %v520 = vpop.xlane.xlu0 %519
    %v521 = vsel %vm385, %v477, 0.0
    %522 = vadd.xlane.f32.xlu0 %v521
    %v523 = vpop.xlane.xlu0 %522
    %v524 = vsel %vm385, %v479, 0.0
    %525 = vadd.xlane.f32.xlu0 %v524
    %v526 = vpop.xlane.xlu0 %525
    %v527 = vsel %vm385, %v481, 0.0
    %528 = vadd.xlane.f32.xlu0 %v527
    %v529 = vpop.xlane.xlu0 %528
    %v530 = vlog2.pop %v484
    %v531 = vmul.f32 %v530, 0.6931472
    %v532 = vlog2.pop %v487
    %v533 = vmul.f32 %v532, 0.6931472
    %v534 = vlog2.pop %v490
    %v535 = vmul.f32 %v534, 0.6931472
    %v536 = vlog2.pop %v493
    %v537 = vmul.f32 %v536, 0.6931472
    %v538 = vlog2.pop %v496
    %v539 = vmul.f32 %v538, 0.6931472
    %v540 = vlog2.pop %v499
    %v541 = vmul.f32 %v540, 0.6931472
    %v542 = vlog2.pop %v502
    %v543 = vmul.f32 %v542, 0.6931472
    %v544 = vlog2.pop %v505
    %v545 = vmul.f32 %v544, 0.6931472
    %v546 = vlog2.pop %v508
    %v547 = vmul.f32 %v546, 0.6931472
    %v548 = vlog2.pop %v511
    %v549 = vmul.f32 %v548, 0.6931472
    %v550 = vlog2.pop %v514
    %v551 = vmul.f32 %v550, 0.6931472
    %v552 = vlog2.pop %v517
    %v553 = vmul.f32 %v552, 0.6931472
    %v554 = vlog2.pop %v520
    %v555 = vmul.f32 %v554, 0.6931472
    %v556 = vlog2.pop %v523
    %v557 = vmul.f32 %v556, 0.6931472
    %v558 = vlog2.pop %v526
    %v559 = vmul.f32 %v558, 0.6931472
    %v560 = vlog2.pop %v529
    %v561 = vmul.f32 %v560, 0.6931472
    %v562 = vsub.f32 %v434, %v531
    %v563 = vsub.f32 %v435, %v533
    %v564 = vsub.f32 %v436, %v535
    %v565 = vsub.f32 %v437, %v537
    %v566 = vsub.f32 %v438, %v539
    %v567 = vsub.f32 %v439, %v541
    %v568 = vsub.f32 %v440, %v543
    %v569 = vsub.f32 %v441, %v545
    %v570 = vsub.f32 %v442, %v547
    %v571 = vsub.f32 %v443, %v549
    %v572 = vsub.f32 %v444, %v551
    %v573 = vsub.f32 %v445, %v553
    %v574 = vsub.f32 %v446, %v555
    %v575 = vsub.f32 %v447, %v557
    %v576 = vsub.f32 %v448, %v559
    %v577 = vsub.f32 %v449, %v561
    %v578 = vcombine.low %v562, %v564
    %v580 = vunpack.c.l.s4 1983009808
    %v581 = vunpack.c.0.s8 %v580
    %v582 = vlaneseq
    %v583 = vshrl.u32 %v582, 7
    %v584 = vsub.s32 %v581, %v583
    %v585 = vrot.slane %v578, %v584
    %v586 = vcombine.low %v563, %v565
    %v588 = vunpack.c.l.s4 1983009808
    %v589 = vunpack.c.0.s8 %v588
    %v590 = vlaneseq
    %v591 = vshrl.u32 %v590, 7
    %v592 = vsub.s32 %v589, %v591
    %v593 = vrot.slane %v586, %v592
    %v594 = vcombine.low %v566, %v568
    %v596 = vunpack.c.l.s4 1983009808
    %v597 = vunpack.c.0.s8 %v596
    %v598 = vlaneseq
    %v599 = vshrl.u32 %v598, 7
    %v600 = vsub.s32 %v597, %v599
    %v601 = vrot.slane %v594, %v600
    %v602 = vcombine.low %v567, %v569
    %v604 = vunpack.c.l.s4 1983009808
    %v605 = vunpack.c.0.s8 %v604
    %v606 = vlaneseq
    %v607 = vshrl.u32 %v606, 7
    %v608 = vsub.s32 %v605, %v607
    %v609 = vrot.slane %v602, %v608
    %v610 = vcombine.low %v585, %v593
    %v611 = vcombine.high %v585, %v593
    %v613 = vunpack.c.l.s4 1934713408
    %v614 = vunpack.c.0.s8 %v613
    %v615 = vlaneseq
    %v616 = vshrl.u32 %v615, 7
    %v617 = vsub.s32 %v614, %v616
    %v618 = vrot.slane %v610, %v617
    %v620 = vunpack.c.l.s4 1934713408
    %v621 = vunpack.c.0.s8 %v620
    %v622 = vlaneseq
    %v623 = vshrl.u32 %v622, 7
    %v624 = vsub.s32 %v621, %v623
    %v625 = vrot.slane %v611, %v624
    %v626 = vcombine.low %v601, %v609
    %v627 = vcombine.high %v601, %v609
    %v629 = vunpack.c.l.s4 1934713408
    %v630 = vunpack.c.0.s8 %v629
    %v631 = vlaneseq
    %v632 = vshrl.u32 %v631, 7
    %v633 = vsub.s32 %v630, %v632
    %v634 = vrot.slane %v626, %v633
    %v636 = vunpack.c.l.s4 1934713408
    %v637 = vunpack.c.0.s8 %v636
    %v638 = vlaneseq
    %v639 = vshrl.u32 %v638, 7
    %v640 = vsub.s32 %v637, %v639
    %v641 = vrot.slane %v627, %v640
    %v642 = vcombine.low %v618, %v634
    %v643 = vcombine.high %v618, %v634
    %v644 = vcombine.low %v625, %v641
    %v645 = vcombine.high %v625, %v641
    %v646 = vcombine.low %v570, %v572
    %v648 = vunpack.c.l.s4 1983009808
    %v649 = vunpack.c.0.s8 %v648
    %v650 = vlaneseq
    %v651 = vshrl.u32 %v650, 7
    %v652 = vsub.s32 %v649, %v651
    %v653 = vrot.slane %v646, %v652
    %v654 = vcombine.low %v571, %v573
    %v656 = vunpack.c.l.s4 1983009808
    %v657 = vunpack.c.0.s8 %v656
    %v658 = vlaneseq
    %v659 = vshrl.u32 %v658, 7
    %v660 = vsub.s32 %v657, %v659
    %v661 = vrot.slane %v654, %v660
    %v662 = vcombine.low %v574, %v576
    %v664 = vunpack.c.l.s4 1983009808
    %v665 = vunpack.c.0.s8 %v664
    %v666 = vlaneseq
    %v667 = vshrl.u32 %v666, 7
    %v668 = vsub.s32 %v665, %v667
    %v669 = vrot.slane %v662, %v668
    %v670 = vcombine.low %v575, %v577
    %v672 = vunpack.c.l.s4 1983009808
    %v673 = vunpack.c.0.s8 %v672
    %v674 = vlaneseq
    %v675 = vshrl.u32 %v674, 7
    %v676 = vsub.s32 %v673, %v675
    %v677 = vrot.slane %v670, %v676
    %v678 = vcombine.low %v653, %v661
    %v679 = vcombine.high %v653, %v661
    %v681 = vunpack.c.l.s4 1934713408
    %v682 = vunpack.c.0.s8 %v681
    %v683 = vlaneseq
    %v684 = vshrl.u32 %v683, 7
    %v685 = vsub.s32 %v682, %v684
    %v686 = vrot.slane %v678, %v685
    %v688 = vunpack.c.l.s4 1934713408
    %v689 = vunpack.c.0.s8 %v688
    %v690 = vlaneseq
    %v691 = vshrl.u32 %v690, 7
    %v692 = vsub.s32 %v689, %v691
    %v693 = vrot.slane %v679, %v692
    %v694 = vcombine.low %v669, %v677
    %v695 = vcombine.high %v669, %v677
    %v697 = vunpack.c.l.s4 1934713408
    %v698 = vunpack.c.0.s8 %v697
    %v699 = vlaneseq
    %v700 = vshrl.u32 %v699, 7
    %v701 = vsub.s32 %v698, %v700
    %v702 = vrot.slane %v694, %v701
    %v704 = vunpack.c.l.s4 1934713408
    %v705 = vunpack.c.0.s8 %v704
    %v706 = vlaneseq
    %v707 = vshrl.u32 %v706, 7
    %v708 = vsub.s32 %v705, %v707
    %v709 = vrot.slane %v695, %v708
    %v710 = vcombine.low %v686, %v702
    %v711 = vcombine.high %v686, %v702
    %v712 = vcombine.low %v693, %v709
    %v713 = vcombine.high %v693, %v709
    %716 = vrot.lane.b32.xlu0 %v643, 6
    %v717 = vpop.permute.xlu0 %716
    %718 = vrot.lane.b32.xlu0 %v711, 6
    %v719 = vpop.permute.xlu0 %718
    %724 = vrot.lane.b32.xlu0 %v644, 12
    %v725 = vpop.permute.xlu0 %724
    %726 = vrot.lane.b32.xlu0 %v712, 12
    %v727 = vpop.permute.xlu0 %726
    %732 = vrot.lane.b32.xlu0 %v645, 18
    %v733 = vpop.permute.xlu0 %732
    %734 = vrot.lane.b32.xlu0 %v713, 18
    %v735 = vpop.permute.xlu0 %734
    %vm738 = vcmask 48128
    %v739 = vsel %vm738, %v642, %v717
    %v740 = vsel %vm738, %v710, %v719
    %vm741 = vcmask 97280
    %v742 = vsel %vm741, %v739, %v725
    %v743 = vsel %vm741, %v740, %v727
    %vm744 = vcmask 146432
    %v745 = vsel %vm744, %v742, %v733
    %v746 = vsel %vm744, %v743, %v735
    %v747 = vrcp.pop %v484
    %v748 = vrcp.pop %v487
    %v749 = vrcp.pop %v490
    %v750 = vrcp.pop %v493
    %v751 = vrcp.pop %v496
    %v752 = vrcp.pop %v499
    %v753 = vrcp.pop %v502
    %v754 = vrcp.pop %v505
    %v755 = vrcp.pop %v508
    %v756 = vrcp.pop %v511
    %v757 = vrcp.pop %v514
    %v758 = vrcp.pop %v517
    %v759 = vrcp.pop %v520
    %v760 = vrcp.pop %v523
    %v761 = vrcp.pop %v526
    %v762 = vrcp.pop %v529
    %v763 = vmul.f32 %v451, %v747
    %v764 = vmul.f32 %v453, %v748
    %v765 = vmul.f32 %v455, %v749
    %v766 = vmul.f32 %v457, %v750
    %v767 = vmul.f32 %v459, %v751
    %v768 = vmul.f32 %v461, %v752
    %v769 = vmul.f32 %v463, %v753
    %v770 = vmul.f32 %v465, %v754
    %v771 = vmul.f32 %v467, %v755
    %v772 = vmul.f32 %v469, %v756
    %v773 = vmul.f32 %v471, %v757
    %v774 = vmul.f32 %v473, %v758
    %v775 = vmul.f32 %v475, %v759
    %v776 = vmul.f32 %v477, %v760
    %v777 = vmul.f32 %v479, %v761
    %v778 = vmul.f32 %v481, %v762
    %v779 = vcombine.low %v763, %v765
    %v781 = vunpack.c.l.s4 1983009808
    %v782 = vunpack.c.0.s8 %v781
    %v783 = vlaneseq
    %v784 = vshrl.u32 %v783, 7
    %v785 = vsub.s32 %v782, %v784
    %v786 = vrot.slane %v779, %v785
    %v787 = vcombine.low %v764, %v766
    %v789 = vunpack.c.l.s4 1983009808
    %v790 = vunpack.c.0.s8 %v789
    %v791 = vlaneseq
    %v792 = vshrl.u32 %v791, 7
    %v793 = vsub.s32 %v790, %v792
    %v794 = vrot.slane %v787, %v793
    %v795 = vcombine.low %v767, %v769
    %v797 = vunpack.c.l.s4 1983009808
    %v798 = vunpack.c.0.s8 %v797
    %v799 = vlaneseq
    %v800 = vshrl.u32 %v799, 7
    %v801 = vsub.s32 %v798, %v800
    %v802 = vrot.slane %v795, %v801
    %v803 = vcombine.low %v768, %v770
    %v805 = vunpack.c.l.s4 1983009808
    %v806 = vunpack.c.0.s8 %v805
    %v807 = vlaneseq
    %v808 = vshrl.u32 %v807, 7
    %v809 = vsub.s32 %v806, %v808
    %v810 = vrot.slane %v803, %v809
    %v811 = vcombine.low %v786, %v794
    %v812 = vcombine.high %v786, %v794
    %v814 = vunpack.c.l.s4 1934713408
    %v815 = vunpack.c.0.s8 %v814
    %v816 = vlaneseq
    %v817 = vshrl.u32 %v816, 7
    %v818 = vsub.s32 %v815, %v817
    %v819 = vrot.slane %v811, %v818
    %v821 = vunpack.c.l.s4 1934713408
    %v822 = vunpack.c.0.s8 %v821
    %v823 = vlaneseq
    %v824 = vshrl.u32 %v823, 7
    %v825 = vsub.s32 %v822, %v824
    %v826 = vrot.slane %v812, %v825
    %v827 = vcombine.low %v802, %v810
    %v828 = vcombine.high %v802, %v810
    %v830 = vunpack.c.l.s4 1934713408
    %v831 = vunpack.c.0.s8 %v830
    %v832 = vlaneseq
    %v833 = vshrl.u32 %v832, 7
    %v834 = vsub.s32 %v831, %v833
    %v835 = vrot.slane %v827, %v834
    %v837 = vunpack.c.l.s4 1934713408
    %v838 = vunpack.c.0.s8 %v837
    %v839 = vlaneseq
    %v840 = vshrl.u32 %v839, 7
    %v841 = vsub.s32 %v838, %v840
    %v842 = vrot.slane %v828, %v841
    %v843 = vcombine.low %v819, %v835
    %v844 = vcombine.high %v819, %v835
    %v845 = vcombine.low %v826, %v842
    %v846 = vcombine.high %v826, %v842
    %v847 = vcombine.low %v771, %v773
    %v849 = vunpack.c.l.s4 1983009808
    %v850 = vunpack.c.0.s8 %v849
    %v851 = vlaneseq
    %v852 = vshrl.u32 %v851, 7
    %v853 = vsub.s32 %v850, %v852
    %v854 = vrot.slane %v847, %v853
    %v855 = vcombine.low %v772, %v774
    %v857 = vunpack.c.l.s4 1983009808
    %v858 = vunpack.c.0.s8 %v857
    %v859 = vlaneseq
    %v860 = vshrl.u32 %v859, 7
    %v861 = vsub.s32 %v858, %v860
    %v862 = vrot.slane %v855, %v861
    %v863 = vcombine.low %v775, %v777
    %v865 = vunpack.c.l.s4 1983009808
    %v866 = vunpack.c.0.s8 %v865
    %v867 = vlaneseq
    %v868 = vshrl.u32 %v867, 7
    %v869 = vsub.s32 %v866, %v868
    %v870 = vrot.slane %v863, %v869
    %v871 = vcombine.low %v776, %v778
    %v873 = vunpack.c.l.s4 1983009808
    %v874 = vunpack.c.0.s8 %v873
    %v875 = vlaneseq
    %v876 = vshrl.u32 %v875, 7
    %v877 = vsub.s32 %v874, %v876
    %v878 = vrot.slane %v871, %v877
    %v879 = vcombine.low %v854, %v862
    %v880 = vcombine.high %v854, %v862
    %v882 = vunpack.c.l.s4 1934713408
    %v883 = vunpack.c.0.s8 %v882
    %v884 = vlaneseq
    %v885 = vshrl.u32 %v884, 7
    %v886 = vsub.s32 %v883, %v885
    %v887 = vrot.slane %v879, %v886
    %v889 = vunpack.c.l.s4 1934713408
    %v890 = vunpack.c.0.s8 %v889
    %v891 = vlaneseq
    %v892 = vshrl.u32 %v891, 7
    %v893 = vsub.s32 %v890, %v892
    %v894 = vrot.slane %v880, %v893
    %v895 = vcombine.low %v870, %v878
    %v896 = vcombine.high %v870, %v878
    %v898 = vunpack.c.l.s4 1934713408
    %v899 = vunpack.c.0.s8 %v898
    %v900 = vlaneseq
    %v901 = vshrl.u32 %v900, 7
    %v902 = vsub.s32 %v899, %v901
    %v903 = vrot.slane %v895, %v902
    %v905 = vunpack.c.l.s4 1934713408
    %v906 = vunpack.c.0.s8 %v905
    %v907 = vlaneseq
    %v908 = vshrl.u32 %v907, 7
    %v909 = vsub.s32 %v906, %v908
    %v910 = vrot.slane %v896, %v909
    %v911 = vcombine.low %v887, %v903
    %v912 = vcombine.high %v887, %v903
    %v913 = vcombine.low %v894, %v910
    %v914 = vcombine.high %v894, %v910
    %917 = vrot.lane.b32.xlu0 %v844, 6
    %v918 = vpop.permute.xlu0 %917
    %919 = vrot.lane.b32.xlu0 %v912, 6
    %v920 = vpop.permute.xlu0 %919
    %925 = vrot.lane.b32.xlu0 %v845, 12
    %v926 = vpop.permute.xlu0 %925
    %927 = vrot.lane.b32.xlu0 %v913, 12
    %v928 = vpop.permute.xlu0 %927
    %933 = vrot.lane.b32.xlu0 %v846, 18
    %v934 = vpop.permute.xlu0 %933
    %935 = vrot.lane.b32.xlu0 %v914, 18
    %v936 = vpop.permute.xlu0 %935
    %v939 = vsel %vm738, %v843, %v918
    %v940 = vsel %vm738, %v911, %v920
    %v941 = vsel %vm741, %v939, %v926
    %v942 = vsel %vm741, %v940, %v928
    %v943 = vsel %vm744, %v941, %v934
    %v944 = vsel %vm744, %v942, %v936
    %947 = vrot.lane.b32.xlu0 %v745, 8
    %v948 = vpop.permute.xlu0 %947
    %949 = vrot.lane.b32.xlu0 %v746, 8
    %v950 = vpop.permute.xlu0 %949
    %955 = vrot.lane.b32.xlu0 %v943, 32
    %v956 = vpop.permute.xlu0 %955
    %957 = vrot.lane.b32.xlu0 %v944, 32
    %v958 = vpop.permute.xlu0 %957
    %vm961 = vcmask 31744
    %v962 = vsel %vm961, %v195, %v209
    %v963 = vsel %vm961, %v198, %v210
    %vm964 = vcmask 64512
    %v965 = vsel %vm964, %v962, %v948
    %v966 = vsel %vm964, %v963, %v950
    %v967 = vsel %vm156, %v965, %v956
    %v968 = vsel %vm156, %v966, %v958
    %vm969 = vcmask 457728
    %970 = vst.msk [vmem:[#allocation8] sm:$0xff] %vm969, %v967
    %971 = vst.msk [vmem:[#allocation8 + $0x8] sm:$0xff] %vm969, %v968
    // Predicated region
    $region34: #{tpu_custom_call.1} parent=1 // pred_check
      _
    $region35: #{tpu_custom_call.1} parent=1 // pred_check_branch
      %973 = sbr.rel (0) target = $region37
    $region36: #{tpu_custom_call.1} parent=1 // pred_region
      %s975 = ssub.s32 256, 256
      %976 = vsyncadd [#allocation4], %s975
      %s977 = sshll.u32 [#allocation8], 4
      %s978 = int_to_ptr.vmem [resolvable:$true] %s977
      %983 = dma.vmem_to_hbm [thread:$0]  %s978, 256, %s5, [#allocation4], 128, 128, 8
    $region37: #{tpu_custom_call.1} parent=1 // pred_fallthru
      _
    // Predicated region
    $region38: #{tpu_custom_call.1} parent=1 // pred_check
      _
    $region39: #{tpu_custom_call.1} parent=1 // pred_check_branch
      %985 = sbr.rel (0) target = $region41
    $region40: #{tpu_custom_call.1} parent=1 // pred_region
      %986 = dma.done [#allocation4], 256
    $region41: #{tpu_custom_call.1} parent=1 // pred_fallthru
      _
    %987 = vsyncpa [#allocation3], 1
    %988 = vsyncpa [#allocation6], 1
    %989 = vsyncpa [#allocation4], 1

</llo_original>
